<compile_context>
chip_gen: v7x
topology: tpu7x:2x2x1
jax: 0.10.0
libtpu: 0.0.40
codegen_flags: <defaults>
</compile_context>

<pallas_src>
import functools

import jax
import jax.numpy as jnp
from jax.experimental import pallas as pl
from jax.experimental.pallas import tpu as pltpu


def _round_up(x, m):
    return ((x + m - 1) // m) * m


def _tpu_defaults():
    """Generation-aware (col_tile, anchor_tile_cap, vmem_limit_bytes)."""
    vmem_bytes = 128 * 1024 * 1024
    try:
        info = pltpu.get_tpu_info()
        vmem_bytes = int(getattr(info, "vmem_capacity_bytes", vmem_bytes))
    except Exception:
        pass
    if vmem_bytes <= 64 * 1024 * 1024:            # v7x-class: 64 MiB VMEM / TC
        return 1024, 256, 48 * 1024 * 1024
    return 2048, 256, 96 * 1024 * 1024            # v5e / v6e: 128 MiB VMEM


def _pick_col_tile(n, col_tile):
    """Column tile: multiple of 128, capped at the padded width, and shrunk
    while the padded last tile would be more than half empty."""
    tn = min(_round_up(int(col_tile), 128), _round_up(n, 128))
    while tn > 128 and tn % 256 == 0 and (_round_up(n, tn) - n) > tn // 2:
        tn //= 2
    return tn


# -----------------------------------------------------------------------------
# Kernel 1: supervised branch (mask is not None)
# -----------------------------------------------------------------------------
def supcon_mask_kernel(anchor_ref, s_m_ref, contrast_ref, mask_ref, o_ref,
                       m_i, l_i, s_ml,
                       *, inv_temp, loss_scale, tb, tn, n_valid):
    i = pl.program_id(0)          # anchor-tile axis ("parallel")
    j = pl.program_id(1)          # contrast-tile axis ("arbitrary", reduction)
    nj = pl.num_programs(1)

    @pl.when(j == 0)
    def _init():
        m_i[...] = jnp.full(m_i.shape, -jnp.inf, m_i.dtype)
        l_i[...] = jnp.zeros(l_i.shape, l_i.dtype)
        s_ml[...] = jnp.zeros(s_ml.shape, s_ml.dtype)

    # (tb, tn) similarity tile: bf16 inputs, f32 accumulation, contracting the
    # shared C axis of both operands (no transpose of the streamed tile).
    adc = jax.lax.dot_general(
        anchor_ref[...], contrast_ref[...],
        dimension_numbers=(((1,), (1,)), ((), ())),
        preferred_element_type=jnp.float32) * inv_temp

    mask_f = mask_ref[...].astype(jnp.float32)

    row0 = i * tb
    col0 = j * tn
    # Masking only matters for column tiles overlapping the anchor diagonal
    # and (if padded) the last tile -> gate the expensive path.
    needs_mask = (col0 < row0 + tb) & (row0 < col0 + tn)
    if n_valid % tn != 0:
        needs_mask = needs_mask | (j == nj - 1)

    @pl.when(needs_mask)
    def _edge():
        row_g = row0 + jax.lax.broadcasted_iota(jnp.int32, (tb, tn), 0)
        col_g = col0 + jax.lax.broadcasted_iota(jnp.int32, (tb, tn), 1)
        in_range = col_g < n_valid
        lmask = (in_range & (col_g != row_g)).astype(jnp.float32)
        pos = mask_f * lmask
        # Running max mirrors PyTorch logits_max: all real columns, self incl.
        m_new = jnp.maximum(
            m_i[...],
            jnp.max(jnp.where(in_range, adc, -jnp.inf), axis=1, keepdims=True))
        alpha = jnp.exp(m_i[...] - m_new)
        l_i[...] = alpha * l_i[...] + jnp.sum(
            jnp.exp(adc - m_new) * lmask, axis=1, keepdims=True)
        s_ml[...] += jnp.sum(pos * adc, axis=1, keepdims=True)
        m_i[...] = m_new

    @pl.when(jnp.logical_not(needs_mask))
    def _fast():
        m_new = jnp.maximum(m_i[...], jnp.max(adc, axis=1, keepdims=True))
        alpha = jnp.exp(m_i[...] - m_new)
        l_i[...] = alpha * l_i[...] + jnp.sum(
            jnp.exp(adc - m_new), axis=1, keepdims=True)
        s_ml[...] += jnp.sum(mask_f * adc, axis=1, keepdims=True)
        m_i[...] = m_new

    @pl.when(j == nj - 1)
    def _finalize():
        # sum(mask * log_prob) = s_ml - s_m * (gmax + log(exp_sum + eps)).
        # 0/0 -> NaN when an anchor row has zero positives (matches PyTorch).
        log_denom = m_i[...] + jnp.log(l_i[...] + 1e-12)
        mean_log_prob_pos = (s_ml[...] - s_m_ref[...] * log_denom) / s_m_ref[...]
        o_ref[...] = -loss_scale * mean_log_prob_pos


def supcon_loss_mask(features, mask, batch_size, temperature=0.07,
                     base_temperature=0.07, col_tile=None, anchor_tile=None,
                     compute_dtype=jnp.bfloat16, vmem_limit_bytes=None):
    """Supervised branch (anchors = features[:batch_size], contrast_mode='one'
    style layout: anchor row r excludes contrast column r)."""
    N, C = features.shape
    B = int(batch_size)
    assert mask.shape == (B, N)

    d_col, d_tb_cap, d_vmem = _tpu_defaults()
    col_tile = d_col if col_tile is None else col_tile
    vmem_limit_bytes = d_vmem if vmem_limit_bytes is None else vmem_limit_bytes
    tb_cap = d_tb_cap if anchor_tile is None else int(anchor_tile)

    tn = _pick_col_tile(N, col_tile)
    n_pad = _round_up(N, tn)
    tb = min(_round_up(B, 8), _round_up(tb_cap, 8))
    b_pad = _round_up(B, tb)

    # Precompute s_m = sum over valid, non-self columns of the positives mask.
    mask_f32 = mask.astype(jnp.float32)
    diag = mask_f32[jnp.arange(B), jnp.arange(B)]
    s_m = (jnp.sum(mask_f32, axis=1) - diag)[:, None]          # (B, 1)

    anchors = features[:B].astype(compute_dtype)               # bf16 stream
    contrast = features.astype(compute_dtype)
    mask_i8 = mask.astype(jnp.int8)      # NOTE: assumes a {0,1} positives mask

    if b_pad != B:
        anchors = jnp.pad(anchors, ((0, b_pad - B), (0, 0)))
        mask_i8 = jnp.pad(mask_i8, ((0, b_pad - B), (0, 0)))
        s_m = jnp.pad(s_m, ((0, b_pad - B), (0, 0)), constant_values=1.0)
    if n_pad != N:
        contrast = jnp.pad(contrast, ((0, n_pad - N), (0, 0)))
        mask_i8 = jnp.pad(mask_i8, ((0, 0), (0, n_pad - N)))

    kernel = functools.partial(
        supcon_mask_kernel,
        inv_temp=float(1.0 / temperature),
        loss_scale=float(temperature / base_temperature),
        tb=tb, tn=tn, n_valid=N)

    per_row = pl.pallas_call(
        kernel,
        out_shape=jax.ShapeDtypeStruct((b_pad, 1), jnp.float32),
        grid_spec=pltpu.PrefetchScalarGridSpec(
            num_scalar_prefetch=0,
            grid=(b_pad // tb, n_pad // tn),          # reduction axis last
            in_specs=[
                pl.BlockSpec((tb, C), lambda i, j: (i, 0)),   # anchors (resident)
                pl.BlockSpec((tb, 1), lambda i, j: (i, 0)),   # s_m (resident)
                pl.BlockSpec((tn, C), lambda i, j: (j, 0)),   # contrast stream
                pl.BlockSpec((tb, tn), lambda i, j: (i, j)),  # mask stream (i8)
            ],
            out_specs=pl.BlockSpec((tb, 1), lambda i, j: (i, 0)),
            scratch_shapes=[pltpu.VMEM((tb, 1), jnp.float32)] * 3),
        compiler_params=pltpu.CompilerParams(
            dimension_semantics=("parallel", "arbitrary"),
            vmem_limit_bytes=int(vmem_limit_bytes)),
    )(anchors, s_m, contrast, mask_i8)
    return jnp.mean(per_row[:B, 0])


# -----------------------------------------------------------------------------
# Kernel 2: MoCo-style branch (mask is None)
# -----------------------------------------------------------------------------
def supcon_moco_kernel(q_ref, lpos_ref, queue_ref, o_ref, m_i, l_i,
                       *, inv_temp, tn, n_valid):
    j = pl.program_id(1)
    nj = pl.num_programs(1)

    @pl.when(j == 0)
    def _init():
        # Fold the (precomputed) positive logit into the logsumexp state.
        m_i[...] = lpos_ref[...]
        l_i[...] = jnp.ones(l_i.shape, l_i.dtype)

    l_neg = jax.lax.dot_general(
        q_ref[...], queue_ref[...],
        dimension_numbers=(((1,), (1,)), ((), ())),
        preferred_element_type=jnp.float32) * inv_temp

    def _acc(vals):
        m_new = jnp.maximum(m_i[...], jnp.max(vals, axis=1, keepdims=True))
        l_i[...] = (jnp.exp(m_i[...] - m_new) * l_i[...]
                    + jnp.sum(jnp.exp(vals - m_new), axis=1, keepdims=True))
        m_i[...] = m_new

    if n_valid % tn != 0:
        @pl.when(j == nj - 1)
        def _edge():           # only the padded last tile pays for the iota
            col_g = j * tn + jax.lax.broadcasted_iota(jnp.int32, l_neg.shape, 1)
            _acc(jnp.where(col_g < n_valid, l_neg, -jnp.inf))

        @pl.when(j < nj - 1)
        def _fast():
            _acc(l_neg)
    else:
        _acc(l_neg)

    @pl.when(j == nj - 1)
    def _finalize():
        # cross_entropy(logits=[l_pos | l_neg], label=0) = lse - l_pos
        o_ref[...] = m_i[...] + jnp.log(l_i[...]) - lpos_ref[...]


def supcon_loss_moco(features, batch_size, temperature=0.07, col_tile=None,
                     anchor_tile=None, compute_dtype=jnp.bfloat16,
                     vmem_limit_bytes=None):
    N, C = features.shape
    B = int(batch_size)
    assert N > 2 * B, "MoCo branch needs a non-empty queue"

    d_col, d_tb_cap, d_vmem = _tpu_defaults()
    col_tile = d_col if col_tile is None else col_tile
    vmem_limit_bytes = d_vmem if vmem_limit_bytes is None else vmem_limit_bytes
    tb_cap = d_tb_cap if anchor_tile is None else int(anchor_tile)

    # l_pos computed once in the wrapper (tiny XLA op) -> no resident k buffer
    # and no j==0 special elementwise dot in the kernel.
    q32 = features[:B].astype(compute_dtype).astype(jnp.float32)
    k32 = features[B:2 * B].astype(compute_dtype).astype(jnp.float32)
    l_pos = jnp.sum(q32 * k32, axis=1, keepdims=True) * (1.0 / temperature)

    q = features[:B].astype(compute_dtype)
    queue = features[2 * B:].astype(compute_dtype)
    K = queue.shape[0]

    tn = _pick_col_tile(K, col_tile)
    k_pad = _round_up(K, tn)
    tb = min(_round_up(B, 8), _round_up(tb_cap, 8))
    b_pad = _round_up(B, tb)

    if b_pad != B:
        q = jnp.pad(q, ((0, b_pad - B), (0, 0)))
        l_pos = jnp.pad(l_pos, ((0, b_pad - B), (0, 0)))
    if k_pad != K:
        queue = jnp.pad(queue, ((0, k_pad - K), (0, 0)))

    kernel = functools.partial(
        supcon_moco_kernel,
        inv_temp=float(1.0 / temperature), tn=tn, n_valid=K)

    per_row = pl.pallas_call(
        kernel,
        out_shape=jax.ShapeDtypeStruct((b_pad, 1), jnp.float32),
        grid_spec=pltpu.PrefetchScalarGridSpec(
            num_scalar_prefetch=0,
            grid=(b_pad // tb, k_pad // tn),
            in_specs=[
                pl.BlockSpec((tb, C), lambda i, j: (i, 0)),   # q (resident)
                pl.BlockSpec((tb, 1), lambda i, j: (i, 0)),   # l_pos (resident)
                pl.BlockSpec((tn, C), lambda i, j: (j, 0)),   # queue stream
            ],
            out_specs=pl.BlockSpec((tb, 1), lambda i, j: (i, 0)),
            scratch_shapes=[pltpu.VMEM((tb, 1), jnp.float32)] * 2),
        compiler_params=pltpu.CompilerParams(
            dimension_semantics=("parallel", "arbitrary"),
            vmem_limit_bytes=int(vmem_limit_bytes)),
    )(q, l_pos, queue)
    return jnp.mean(per_row[:B, 0])


# -----------------------------------------------------------------------------
# Pure-JAX references (mirror the PyTorch code) for the correctness check
# -----------------------------------------------------------------------------
def ref_mask(features, mask, B, T=0.07, baseT=0.07):
    adc = (features[:B] @ features.T) / T
    logits = adc - jnp.max(adc, axis=1, keepdims=True)
    N = features.shape[0]
    logits_mask = jnp.ones((B, N)).at[jnp.arange(B), jnp.arange(B)].set(0.0)
    m = mask * logits_mask
    exp_logits = jnp.exp(logits) * logits_mask
    log_prob = logits - jnp.log(exp_logits.sum(1, keepdims=True) + 1e-12)
    mlpp = (m * log_prob).sum(1) / m.sum(1)
    return jnp.mean(-(T / baseT) * mlpp)


def ref_moco(features, B, T=0.07):
    q, k, queue = features[:B], features[B:2 * B], features[2 * B:]
    l_pos = jnp.sum(q * k, axis=1, keepdims=True)
    l_neg = q @ queue.T
    logits = jnp.concatenate([l_pos, l_neg], axis=1) / T
    logZ = jax.scipy.special.logsumexp(logits, axis=1)
    return jnp.mean(logZ - logits[:, 0])


# -----------------------------------------------------------------------------
if __name__ == "__main__":
    key = jax.random.PRNGKey(0)
    B, N, C = 8, 1000, 128       # N not a multiple of the column tile on purpose

    features = jax.random.normal(key, (N, C), dtype=jnp.float32)
    features = features / jnp.linalg.norm(features, axis=1, keepdims=True)

    # Deterministic labels -> every anchor row has at least one positive
    # (avoids the 0/0 NaN that the PyTorch original also produces).
    labels = jnp.arange(N) % 4
    mask = (labels[:B, None] == labels[None, :]).astype(jnp.float32)

    # The kernels stream bf16 features to the MXU, so evaluate the reference
    # on the same bf16-rounded values for a like-for-like comparison.
    feat_q = features.astype(jnp.bfloat16).astype(jnp.float32)

    # Supervised branch: 4 contrast tiles of 256 cols (last one padded),
    # diag-overlap tile and padded tile take the masked path, middle tiles the
    # cheap path.
    loss1 = supcon_loss_mask(features, mask, B, col_tile=256)
    jax.block_until_ready(loss1)
    ref1 = ref_mask(feat_q, mask, B)

    # MoCo branch: queue of 984 rows, padded to 4 tiles of 256.
    loss2 = supcon_loss_moco(features, B, col_tile=256)
    jax.block_until_ready(loss2)
    ref2 = ref_moco(feat_q, B)

    assert jnp.allclose(loss1, ref1, atol=2e-3, rtol=2e-3), (loss1, ref1)
    assert jnp.allclose(loss2, ref2, atol=2e-3, rtol=2e-3), (loss2, ref2)

    # TODO(synk): PyTorch's contrast_mode='all' variant (anchors = all N rows)
    # is out of scope here; this mirrors the trainer.py usage (anchors=[:B]).
    print("KERNEL_OK")
</pallas_src>

<mosaic_0001>
module attributes {stable_mosaic.version = 11 : i64} {
  func.func @supcon_mask_kernel(%arg0: i32, %arg1: i32, %arg2: memref<8x128xbf16, #tpu.memory_space<vmem>>, %arg3: memref<8x1xf32, #tpu.memory_space<vmem>>, %arg4: memref<256x128xbf16, #tpu.memory_space<vmem>>, %arg5: memref<8x256xi8, #tpu.memory_space<vmem>>, %arg6: memref<8x1xf32, #tpu.memory_space<vmem>>, %arg7: memref<8x1xf32, #tpu.memory_space<vmem>>, %arg8: memref<8x1xf32, #tpu.memory_space<vmem>>, %arg9: memref<8x1xf32, #tpu.memory_space<vmem>>) attributes {dimension_semantics = [#tpu.dimension_semantics<parallel>, #tpu.dimension_semantics<arbitrary>], iteration_bounds = array<i64: 1, 4>, scalar_prefetch = 0 : i64, scratch_operands = 3 : i64, tpu.core_type = #tpu.core_type<tc>, window_params = [{transform_indices = @transform_0, window_bounds = array<i64: 8, 128>}, {transform_indices = @transform_1, window_bounds = array<i64: 8, 1>}, {transform_indices = @transform_2, window_bounds = array<i64: 256, 128>}, {transform_indices = @transform_3, window_bounds = array<i64: 8, 256>}, {transform_indices = @transform_4, window_bounds = array<i64: 8, 1>}]} {
    %c0_i32 = arith.constant 0 : i32
    %0 = arith.cmpi eq, %arg1, %c0_i32 : i32
    %1 = arith.extui %0 : i1 to i32
    %c0_i32_0 = arith.constant 0 : i32
    %2 = arith.cmpi ne, %1, %c0_i32_0 : i32
    scf.if %2 {
      %cst_13 = arith.constant 0xFF800000 : f32
      %27 = vector.broadcast %cst_13 : f32 to vector<8x1xf32>
      %c0_14 = arith.constant 0 : index
      %c0_15 = arith.constant 0 : index
      %28 = vector.load %arg7[%c0_14, %c0_15] : memref<8x1xf32, #tpu.memory_space<vmem>>, vector<8x1xf32>
      tpu.vector_store %arg7[%c0_14, %c0_15], %27 {strides = array<i32>} : memref<8x1xf32, #tpu.memory_space<vmem>>, vector<8x1xf32>,
      %cst_16 = arith.constant 0.000000e+00 : f32
      %29 = vector.broadcast %cst_16 : f32 to vector<8x1xf32>
      %c0_17 = arith.constant 0 : index
      %c0_18 = arith.constant 0 : index
      %30 = vector.load %arg8[%c0_17, %c0_18] : memref<8x1xf32, #tpu.memory_space<vmem>>, vector<8x1xf32>
      tpu.vector_store %arg8[%c0_17, %c0_18], %29 {strides = array<i32>} : memref<8x1xf32, #tpu.memory_space<vmem>>, vector<8x1xf32>,
      %cst_19 = arith.constant 0.000000e+00 : f32
      %31 = vector.broadcast %cst_19 : f32 to vector<8x1xf32>
      %c0_20 = arith.constant 0 : index
      %c0_21 = arith.constant 0 : index
      %32 = vector.load %arg9[%c0_20, %c0_21] : memref<8x1xf32, #tpu.memory_space<vmem>>, vector<8x1xf32>
      tpu.vector_store %arg9[%c0_20, %c0_21], %31 {strides = array<i32>} : memref<8x1xf32, #tpu.memory_space<vmem>>, vector<8x1xf32>,
    } else {
    }
    %c0 = arith.constant 0 : index
    %c0_1 = arith.constant 0 : index
    %3 = vector.load %arg2[%c0, %c0_1] : memref<8x128xbf16, #tpu.memory_space<vmem>>, vector<8x128xbf16>
    %c0_2 = arith.constant 0 : index
    %c0_3 = arith.constant 0 : index
    %4 = vector.load %arg4[%c0_2, %c0_3] : memref<256x128xbf16, #tpu.memory_space<vmem>>, vector<256x128xbf16>
    %cst = arith.constant dense<0.000000e+00> : vector<8x256xf32>
    %5 = tpu.matmul %3, %4, %cst {dimension_numbers = #tpu.dot_dimension_numbers<[1], [1], [0], [0], [0, 0, 1, 0], [], []>} : vector<8x128xbf16>, vector<256x128xbf16>, vector<8x256xf32> -> vector<8x256xf32>
    %cst_4 = arith.constant 14.2857141 : f32
    %6 = vector.broadcast %cst_4 : f32 to vector<8x256xf32>
    %7 = arith.mulf %5, %6 : vector<8x256xf32>
    %c0_5 = arith.constant 0 : index
    %c0_6 = arith.constant 0 : index
    %8 = vector.load %arg5[%c0_5, %c0_6] : memref<8x256xi8, #tpu.memory_space<vmem>>, vector<8x256xi8>
    %9 = arith.sitofp %8 : vector<8x256xi8> to vector<8x256xf32>
    %c8_i32 = arith.constant 8 : i32
    %10 = arith.muli %arg0, %c8_i32 : i32
    %c256_i32 = arith.constant 256 : i32
    %11 = arith.muli %arg1, %c256_i32 : i32
    %c8_i32_7 = arith.constant 8 : i32
    %12 = arith.addi %10, %c8_i32_7 : i32
    %13 = arith.cmpi slt, %11, %12 : i32
    %c256_i32_8 = arith.constant 256 : i32
    %14 = arith.addi %11, %c256_i32_8 : i32
    %15 = arith.cmpi slt, %10, %14 : i32
    %16 = arith.andi %13, %15 : i1
    %c3_i32 = arith.constant 3 : i32
    %17 = arith.cmpi eq, %arg1, %c3_i32 : i32
    %18 = arith.ori %16, %17 : i1
    %19 = arith.extui %18 : i1 to i32
    %c0_i32_9 = arith.constant 0 : i32
    %20 = arith.cmpi ne, %19, %c0_i32_9 : i32
    scf.if %20 {
      %27 = tpu.iota {dimensions = array<i32: 0>} : vector<8x256xi32>
      %28 = vector.broadcast %10 : i32 to vector<8x256xi32>
      %29 = arith.addi %28, %27 : vector<8x256xi32>
      %30 = tpu.iota {dimensions = array<i32: 1>} : vector<8x256xi32>
      %31 = vector.broadcast %11 : i32 to vector<8x256xi32>
      %32 = arith.addi %31, %30 : vector<8x256xi32>
      %c1000_i32 = arith.constant 1000 : i32
      %33 = vector.broadcast %c1000_i32 : i32 to vector<8x256xi32>
      %34 = arith.cmpi slt, %32, %33 : vector<8x256xi32>
      %35 = arith.cmpi ne, %32, %29 : vector<8x256xi32>
      %36 = arith.andi %34, %35 : vector<8x256xi1>
      %37 = arith.extui %36 : vector<8x256xi1> to vector<8x256xi32>
      %38 = arith.sitofp %37 : vector<8x256xi32> to vector<8x256xf32>
      %39 = arith.mulf %9, %38 : vector<8x256xf32>
      %c0_13 = arith.constant 0 : index
      %c0_14 = arith.constant 0 : index
      %40 = vector.load %arg7[%c0_13, %c0_14] : memref<8x1xf32, #tpu.memory_space<vmem>>, vector<8x1xf32>
      %cst_15 = arith.constant 0xFF800000 : f32
      %41 = vector.broadcast %cst_15 : f32 to vector<8x256xf32>
      %42 = arith.select %34, %7, %41 : vector<8x256xi1>, vector<8x256xf32>
      %cst_16 = arith.constant dense<0xFF800000> : vector<8xf32>
      %43 = vector.multi_reduction <maximumf>, %42, %cst_16 [1] : vector<8x256xf32> to vector<8xf32>
      %44 = vector.shape_cast %43 : vector<8xf32> to vector<8x1xf32>
      %45 = arith.maximumf %40, %44 : vector<8x1xf32>
      %c0_17 = arith.constant 0 : index
      %c0_18 = arith.constant 0 : index
      %46 = vector.load %arg7[%c0_17, %c0_18] : memref<8x1xf32, #tpu.memory_space<vmem>>, vector<8x1xf32>
      %47 = arith.subf %46, %45 : vector<8x1xf32>
      %48 = math.exp %47 : vector<8x1xf32>
      %c0_19 = arith.constant 0 : index
      %c0_20 = arith.constant 0 : index
      %49 = vector.load %arg8[%c0_19, %c0_20] : memref<8x1xf32, #tpu.memory_space<vmem>>, vector<8x1xf32>
      %50 = arith.mulf %48, %49 : vector<8x1xf32>
      %51 = vector.broadcast %45 : vector<8x1xf32> to vector<8x256xf32>
      %52 = arith.subf %7, %51 : vector<8x256xf32>
      %53 = math.exp %52 : vector<8x256xf32>
      %54 = arith.mulf %53, %38 : vector<8x256xf32>
      %cst_21 = arith.constant dense<0.000000e+00> : vector<8xf32>
      %55 = vector.multi_reduction <add>, %54, %cst_21 [1] : vector<8x256xf32> to vector<8xf32>
      %56 = vector.shape_cast %55 : vector<8xf32> to vector<8x1xf32>
      %57 = arith.addf %50, %56 : vector<8x1xf32>
      %c0_22 = arith.constant 0 : index
      %c0_23 = arith.constant 0 : index
      %58 = vector.load %arg8[%c0_22, %c0_23] : memref<8x1xf32, #tpu.memory_space<vmem>>, vector<8x1xf32>
      tpu.vector_store %arg8[%c0_22, %c0_23], %57 {strides = array<i32>} : memref<8x1xf32, #tpu.memory_space<vmem>>, vector<8x1xf32>,
      %c0_24 = arith.constant 0 : index
      %c0_25 = arith.constant 0 : index
      %59 = vector.load %arg9[%c0_24, %c0_25] : memref<8x1xf32, #tpu.memory_space<vmem>>, vector<8x1xf32>
      %60 = arith.mulf %39, %7 : vector<8x256xf32>
      %cst_26 = arith.constant dense<0.000000e+00> : vector<8xf32>
      %61 = vector.multi_reduction <add>, %60, %cst_26 [1] : vector<8x256xf32> to vector<8xf32>
      %62 = vector.shape_cast %61 : vector<8xf32> to vector<8x1xf32>
      %63 = arith.addf %59, %62 : vector<8x1xf32>
      %c0_27 = arith.constant 0 : index
      %c0_28 = arith.constant 0 : index
      %64 = vector.load %arg9[%c0_27, %c0_28] : memref<8x1xf32, #tpu.memory_space<vmem>>, vector<8x1xf32>
      tpu.vector_store %arg9[%c0_27, %c0_28], %63 {strides = array<i32>} : memref<8x1xf32, #tpu.memory_space<vmem>>, vector<8x1xf32>,
      %c0_29 = arith.constant 0 : index
      %c0_30 = arith.constant 0 : index
      %65 = vector.load %arg7[%c0_29, %c0_30] : memref<8x1xf32, #tpu.memory_space<vmem>>, vector<8x1xf32>
      tpu.vector_store %arg7[%c0_29, %c0_30], %45 {strides = array<i32>} : memref<8x1xf32, #tpu.memory_space<vmem>>, vector<8x1xf32>,
    } else {
    }
    %true = arith.constant true
    %21 = arith.xori %18, %true : i1
    %22 = arith.extui %21 : i1 to i32
    %c0_i32_10 = arith.constant 0 : i32
    %23 = arith.cmpi ne, %22, %c0_i32_10 : i32
    scf.if %23 {
      %c0_13 = arith.constant 0 : index
      %c0_14 = arith.constant 0 : index
      %27 = vector.load %arg7[%c0_13, %c0_14] : memref<8x1xf32, #tpu.memory_space<vmem>>, vector<8x1xf32>
      %cst_15 = arith.constant dense<0xFF800000> : vector<8xf32>
      %28 = vector.multi_reduction <maximumf>, %7, %cst_15 [1] : vector<8x256xf32> to vector<8xf32>
      %29 = vector.shape_cast %28 : vector<8xf32> to vector<8x1xf32>
      %30 = arith.maximumf %27, %29 : vector<8x1xf32>
      %c0_16 = arith.constant 0 : index
      %c0_17 = arith.constant 0 : index
      %31 = vector.load %arg7[%c0_16, %c0_17] : memref<8x1xf32, #tpu.memory_space<vmem>>, vector<8x1xf32>
      %32 = arith.subf %31, %30 : vector<8x1xf32>
      %33 = math.exp %32 : vector<8x1xf32>
      %c0_18 = arith.constant 0 : index
      %c0_19 = arith.constant 0 : index
      %34 = vector.load %arg8[%c0_18, %c0_19] : memref<8x1xf32, #tpu.memory_space<vmem>>, vector<8x1xf32>
      %35 = arith.mulf %33, %34 : vector<8x1xf32>
      %36 = vector.broadcast %30 : vector<8x1xf32> to vector<8x256xf32>
      %37 = arith.subf %7, %36 : vector<8x256xf32>
      %38 = math.exp %37 : vector<8x256xf32>
      %cst_20 = arith.constant dense<0.000000e+00> : vector<8xf32>
      %39 = vector.multi_reduction <add>, %38, %cst_20 [1] : vector<8x256xf32> to vector<8xf32>
      %40 = vector.shape_cast %39 : vector<8xf32> to vector<8x1xf32>
      %41 = arith.addf %35, %40 : vector<8x1xf32>
      %c0_21 = arith.constant 0 : index
      %c0_22 = arith.constant 0 : index
      %42 = vector.load %arg8[%c0_21, %c0_22] : memref<8x1xf32, #tpu.memory_space<vmem>>, vector<8x1xf32>
      tpu.vector_store %arg8[%c0_21, %c0_22], %41 {strides = array<i32>} : memref<8x1xf32, #tpu.memory_space<vmem>>, vector<8x1xf32>,
      %c0_23 = arith.constant 0 : index
      %c0_24 = arith.constant 0 : index
      %43 = vector.load %arg9[%c0_23, %c0_24] : memref<8x1xf32, #tpu.memory_space<vmem>>, vector<8x1xf32>
      %44 = arith.mulf %9, %7 : vector<8x256xf32>
      %cst_25 = arith.constant dense<0.000000e+00> : vector<8xf32>
      %45 = vector.multi_reduction <add>, %44, %cst_25 [1] : vector<8x256xf32> to vector<8xf32>
      %46 = vector.shape_cast %45 : vector<8xf32> to vector<8x1xf32>
      %47 = arith.addf %43, %46 : vector<8x1xf32>
      %c0_26 = arith.constant 0 : index
      %c0_27 = arith.constant 0 : index
      %48 = vector.load %arg9[%c0_26, %c0_27] : memref<8x1xf32, #tpu.memory_space<vmem>>, vector<8x1xf32>
      tpu.vector_store %arg9[%c0_26, %c0_27], %47 {strides = array<i32>} : memref<8x1xf32, #tpu.memory_space<vmem>>, vector<8x1xf32>,
      %c0_28 = arith.constant 0 : index
      %c0_29 = arith.constant 0 : index
      %49 = vector.load %arg7[%c0_28, %c0_29] : memref<8x1xf32, #tpu.memory_space<vmem>>, vector<8x1xf32>
      tpu.vector_store %arg7[%c0_28, %c0_29], %30 {strides = array<i32>} : memref<8x1xf32, #tpu.memory_space<vmem>>, vector<8x1xf32>,
    } else {
    }
    %c3_i32_11 = arith.constant 3 : i32
    %24 = arith.cmpi eq, %arg1, %c3_i32_11 : i32
    %25 = arith.extui %24 : i1 to i32
    %c0_i32_12 = arith.constant 0 : i32
    %26 = arith.cmpi ne, %25, %c0_i32_12 : i32
    scf.if %26 {
      %c0_13 = arith.constant 0 : index
      %c0_14 = arith.constant 0 : index
      %27 = vector.load %arg7[%c0_13, %c0_14] : memref<8x1xf32, #tpu.memory_space<vmem>>, vector<8x1xf32>
      %c0_15 = arith.constant 0 : index
      %c0_16 = arith.constant 0 : index
      %28 = vector.load %arg8[%c0_15, %c0_16] : memref<8x1xf32, #tpu.memory_space<vmem>>, vector<8x1xf32>
      %cst_17 = arith.constant 9.99999996E-13 : f32
      %29 = vector.broadcast %cst_17 : f32 to vector<8x1xf32>
      %30 = arith.addf %28, %29 : vector<8x1xf32>
      %31 = math.log %30 : vector<8x1xf32>
      %32 = arith.addf %27, %31 : vector<8x1xf32>
      %c0_18 = arith.constant 0 : index
      %c0_19 = arith.constant 0 : index
      %33 = vector.load %arg9[%c0_18, %c0_19] : memref<8x1xf32, #tpu.memory_space<vmem>>, vector<8x1xf32>
      %c0_20 = arith.constant 0 : index
      %c0_21 = arith.constant 0 : index
      %34 = vector.load %arg3[%c0_20, %c0_21] : memref<8x1xf32, #tpu.memory_space<vmem>>, vector<8x1xf32>
      %35 = arith.mulf %34, %32 : vector<8x1xf32>
      %36 = arith.subf %33, %35 : vector<8x1xf32>
      %c0_22 = arith.constant 0 : index
      %c0_23 = arith.constant 0 : index
      %37 = vector.load %arg3[%c0_22, %c0_23] : memref<8x1xf32, #tpu.memory_space<vmem>>, vector<8x1xf32>
      %38 = arith.divf %36, %37 : vector<8x1xf32>
      %cst_24 = arith.constant -1.000000e+00 : f32
      %39 = vector.broadcast %cst_24 : f32 to vector<8x1xf32>
      %40 = arith.mulf %39, %38 : vector<8x1xf32>
      %c0_25 = arith.constant 0 : index
      %c0_26 = arith.constant 0 : index
      %41 = vector.load %arg6[%c0_25, %c0_26] : memref<8x1xf32, #tpu.memory_space<vmem>>, vector<8x1xf32>
      tpu.vector_store %arg6[%c0_25, %c0_26], %40 {strides = array<i32>} : memref<8x1xf32, #tpu.memory_space<vmem>>, vector<8x1xf32>,
    } else {
    }
    return
  }
  func.func @transform_0(%arg0: i32, %arg1: i32) -> (i32, i32) {
    %c0_i32 = arith.constant 0 : i32
    %c0_i32_0 = arith.constant 0 : i32
    return %arg0, %c0_i32 : i32, i32
  }
  func.func @transform_1(%arg0: i32, %arg1: i32) -> (i32, i32) {
    %c0_i32 = arith.constant 0 : i32
    %c0_i32_0 = arith.constant 0 : i32
    return %arg0, %c0_i32 : i32, i32
  }
  func.func @transform_2(%arg0: i32, %arg1: i32) -> (i32, i32) {
    %c0_i32 = arith.constant 0 : i32
    %c0_i32_0 = arith.constant 0 : i32
    return %arg1, %c0_i32 : i32, i32
  }
  func.func @transform_3(%arg0: i32, %arg1: i32) -> (i32, i32) {
    %c0_i32 = arith.constant 0 : i32
    return %arg0, %arg1 : i32, i32
  }
  func.func @transform_4(%arg0: i32, %arg1: i32) -> (i32, i32) {
    %c0_i32 = arith.constant 0 : i32
    %c0_i32_0 = arith.constant 0 : i32
    return %arg0, %c0_i32 : i32, i32
  }
}

</mosaic_0001>

<llo_original>
// kernel: tpu_custom_call.1
$region0: #{tpu_custom_call.1}
  #allocation0 [shape = 'u32[]', space=smem, size = 0x4, offset = 0x4, fixed_abs, tag = 'smem constant byte address 0x4 - core index']
  #allocation1 [shape = 'u32[144,128]{1,0:T(1,128)}', space=vmem, size = 0x12000, scoped, tag = 'internal scratch']
  #allocation2 [shape = 'f32[8,1]{1,0:T(8,128)}', space=vmem, size = 0x1000, scoped, tag = 'scratch operand']
  #allocation3 [shape = 'f32[8,1]{1,0:T(8,128)}', space=vmem, size = 0x1000, scoped, tag = 'scratch operand']
  #allocation4 [shape = 'f32[8,1]{1,0:T(8,128)}', space=vmem, size = 0x1000, scoped, tag = 'scratch operand']
  %s0 = inlined_call_operand.hbm [shape: bf16[8,128], index: 0, kind: input, shape index: {}]
  %s1 = inlined_call_operand.hbm [shape: f32[8,1], index: 1, kind: input, shape index: {}]
  %s2 = inlined_call_operand.hbm [shape: bf16[1024,128], index: 2, kind: input, shape index: {}]
  %s3 = inlined_call_operand.hbm [shape: s8[8,1024], index: 3, kind: input, shape index: {}]
  %s4 = inlined_call_operand.hbm [shape: f32[8,1], index: 4, kind: output, shape index: {}]
  %s5 = sld [smem:[#allocation0]]
  $region81: #{tpu_custom_call.1} parent=0
    _
  %s7 = ssub.s32 1, %s5
  %s8 = scalar_select 0, %s7, %s5
  $region1: #{tpu_custom_call.1} parent=0
    #allocation5 [shape = 'u8[2048]{0}', space=vmem, size = 0x800, scoped, tag = 'input window, operand 0, single buffered']
    #allocation6 [shape = 's32[2]{0}', space=sflag, size = 0x8, scoped, tag = 'scoped memory for tpu_custom_call.1']
    #allocation7 [shape = 's32[2]{0}', space=sflag, size = 0x8, scoped, tag = 'scoped memory for tpu_custom_call.1']
    #allocation8 [shape = 'u8[4096]{0}', space=vmem, size = 0x1000, scoped, tag = 'input window, operand 1, single buffered']
    #allocation9 [shape = 's32[1]{0}', space=sflag, size = 0x4, scoped, tag = 'scoped memory for tpu_custom_call.1']
    #allocation10 [shape = 'u8[131072]{0}', space=vmem, size = 0x20000, scoped, tag = 'input window, operand 2']
    #allocation11 [shape = 'u8[4096]{0}', space=vmem, size = 0x1000, scoped, tag = 'input window, operand 3']
    #allocation12 [shape = 'u8[4096]{0}', space=vmem, size = 0x1000, scoped, tag = 'output window, operand 0, single buffered']
    %9 = vsyncpa [#allocation6], 0
    %10 = vsyncpa [#allocation9], 0
    %11 = vsyncpa [#allocation7], 0
    loop: start=0, step=1, limit=6
    $region2: #{tpu_custom_call.1} parent=1 // loop_pre_header
      _
    $region3: #{tpu_custom_call.1} parent=1 // loop_header
      %s13 = sphi 0, %s17
      %p14 = scmp.ge.s32.totalorder %s13, 6
      %s20 = sphi 0, %s32
      %s21 = sphi 0, %s28
      %s22 = sphi 0, %s20
      %s23 = sphi 0, %s21
      %s24 = sphi 0, %s22
      %s25 = sphi 0, %s23
      %s35 = sphi 0, %s37
      %s38 = sphi 0, %s35
      %s39 = sphi 0, %s38
      %s55 = sphi 0, %s39
      %s61 = sphi 0, %s63
      %s64 = sphi 0, %s61
      %s65 = sphi 0, %s64
      %s81 = sphi 0, %s65
      %s87 = sphi 0, %s89
      %s90 = sphi 0, %s87
      %s91 = sphi 0, %s90
      %s107 = sphi 0, %s91
      %s115 = sphi 0, %s117
      %s118 = sphi 0, %s115
      %s119 = sphi 0, %s118
      %s135 = sphi 0, %s119
      %s141 = sphi 0, %s143
      %s144 = sphi 0, %s141
      %s145 = sphi 0, %s144
      %s161 = sphi 0, %s145
    $region4: #{tpu_custom_call.1} parent=1 // loop_header_branch
      %16 = sbr.rel (%p14) target = $region8
    $region5: #{tpu_custom_call.1} parent=1 // loop_body
      %s18 = ssub.s32 %s13, 1
      %s19 = ssub.s32 %s13, 2
      %s26 = sadd.s32 1, %s21
      %p27 = scmp.ge.s32.totalorder %s26, 4
      %s28 = scalar_select %p27, 0, %s26
      %s29 = sadd.s32 1, %s20
      %s30 = scalar_select %p27, %s29, %s20
      %p31 = scmp.ge.s32.totalorder %s30, 1
      %s32 = scalar_select %p31, 0, %s30
      %s33 = ssub.s32 %s20, %s32
      %p34 = scmp.eq.s32.totalorder %s33, 0
      %s36 = sadd.s32 %s35, 1
      %s37 = scalar_select %p34, %s35, %s36
      %p40 = pneg %p34
      %p41 = scmp.eq.s32.totalorder %s13, 3
      %p42 = por %p40, %p41
      %p43 = scmp.ne.s32.totalorder %s35, %s38
      %p44 = scmp.eq.s32.totalorder %s13, 0
      %p45 = por %p43, %p44
      %p46 = scmp.ne.s32.totalorder %s35, %s38
      %p47 = scmp.eq.s32.totalorder %s18, 3
      %p48 = por %p46, %p47
      %p49 = scmp.ne.s32.totalorder %s38, %s39
      %p50 = scmp.eq.s32.totalorder %s18, 0
      %p51 = por %p49, %p50
      %p52 = scmp.ne.s32.totalorder %s38, %s39
      %p53 = scmp.eq.s32.totalorder %s19, 3
      %p54 = por %p52, %p53
      %p56 = scmp.ne.s32.totalorder %s39, %s55
      %p57 = scmp.eq.s32.totalorder %s19, 0
      %p58 = por %p56, %p57
      %s59 = ssub.s32 %s20, %s32
      %p60 = scmp.eq.s32.totalorder %s59, 0
      %s62 = sadd.s32 %s61, 1
      %s63 = scalar_select %p60, %s61, %s62
      %p66 = pneg %p60
      %p67 = scmp.eq.s32.totalorder %s13, 3
      %p68 = por %p66, %p67
      %p69 = scmp.ne.s32.totalorder %s61, %s64
      %p70 = scmp.eq.s32.totalorder %s13, 0
      %p71 = por %p69, %p70
      %p72 = scmp.ne.s32.totalorder %s61, %s64
      %p73 = scmp.eq.s32.totalorder %s18, 3
      %p74 = por %p72, %p73
      %p75 = scmp.ne.s32.totalorder %s64, %s65
      %p76 = scmp.eq.s32.totalorder %s18, 0
      %p77 = por %p75, %p76
      %p78 = scmp.ne.s32.totalorder %s64, %s65
      %p79 = scmp.eq.s32.totalorder %s19, 3
      %p80 = por %p78, %p79
      %p82 = scmp.ne.s32.totalorder %s65, %s81
      %p83 = scmp.eq.s32.totalorder %s19, 0
      %p84 = por %p82, %p83
      %s85 = ssub.s32 %s21, %s28
      %p86 = scmp.eq.s32.totalorder %s85, 0
      %s88 = sadd.s32 %s87, 1
      %s89 = scalar_select %p86, %s87, %s88
      %p92 = pneg %p86
      %p93 = scmp.eq.s32.totalorder %s13, 3
      %p94 = por %p92, %p93
      %p95 = scmp.ne.s32.totalorder %s87, %s90
      %p96 = scmp.eq.s32.totalorder %s13, 0
      %p97 = por %p95, %p96
      %p98 = scmp.ne.s32.totalorder %s87, %s90
      %p99 = scmp.eq.s32.totalorder %s18, 3
      %p100 = por %p98, %p99
      %p101 = scmp.ne.s32.totalorder %s90, %s91
      %p102 = scmp.eq.s32.totalorder %s18, 0
      %p103 = por %p101, %p102
      %p104 = scmp.ne.s32.totalorder %s90, %s91
      %p105 = scmp.eq.s32.totalorder %s19, 3
      %p106 = por %p104, %p105
      %p108 = scmp.ne.s32.totalorder %s91, %s107
      %p109 = scmp.eq.s32.totalorder %s19, 0
      %p110 = por %p108, %p109
      %s111 = ssub.s32 %s20, %s32
      %s112 = ssub.s32 %s21, %s28
      %s113 = sor.u32 %s111, %s112
      %p114 = scmp.eq.s32.totalorder %s113, 0
      %s116 = sadd.s32 %s115, 1
      %s117 = scalar_select %p114, %s115, %s116
      %p120 = pneg %p114
      %p121 = scmp.eq.s32.totalorder %s13, 3
      %p122 = por %p120, %p121
      %p123 = scmp.ne.s32.totalorder %s115, %s118
      %p124 = scmp.eq.s32.totalorder %s13, 0
      %p125 = por %p123, %p124
      %p126 = scmp.ne.s32.totalorder %s115, %s118
      %p127 = scmp.eq.s32.totalorder %s18, 3
      %p128 = por %p126, %p127
      %p129 = scmp.ne.s32.totalorder %s118, %s119
      %p130 = scmp.eq.s32.totalorder %s18, 0
      %p131 = por %p129, %p130
      %p132 = scmp.ne.s32.totalorder %s118, %s119
      %p133 = scmp.eq.s32.totalorder %s19, 3
      %p134 = por %p132, %p133
      %p136 = scmp.ne.s32.totalorder %s119, %s135
      %p137 = scmp.eq.s32.totalorder %s19, 0
      %p138 = por %p136, %p137
      %s139 = ssub.s32 %s20, %s32
      %p140 = scmp.eq.s32.totalorder %s139, 0
      %s142 = sadd.s32 %s141, 1
      %s143 = scalar_select %p140, %s141, %s142
      %p146 = pneg %p140
      %p147 = scmp.eq.s32.totalorder %s13, 3
      %p148 = por %p146, %p147
      %p149 = scmp.ne.s32.totalorder %s141, %s144
      %p150 = scmp.eq.s32.totalorder %s13, 0
      %p151 = por %p149, %p150
      %p152 = scmp.ne.s32.totalorder %s141, %s144
      %p153 = scmp.eq.s32.totalorder %s18, 3
      %p154 = por %p152, %p153
      %p155 = scmp.ne.s32.totalorder %s144, %s145
      %p156 = scmp.eq.s32.totalorder %s18, 0
      %p157 = por %p155, %p156
      %p158 = scmp.ne.s32.totalorder %s144, %s145
      %p159 = scmp.eq.s32.totalorder %s19, 3
      %p160 = por %p158, %p159
      %p162 = scmp.ne.s32.totalorder %s145, %s161
      %p163 = scmp.eq.s32.totalorder %s19, 0
      %p164 = por %p162, %p163
      %p165 = scmp.le.s32.totalorder 1, %s13
      %p166 = scmp.lt.s32.totalorder %s13, 5
      %p167 = pnand %p165, %p166
      %p168 = pneg %p167
      // Predicated region
      $region9: #{tpu_custom_call.1} parent=5 // pred_check
        _
      $region10: #{tpu_custom_call.1} parent=5 // pred_check_branch
        %170 = sbr.rel (%p167) target = $region12
      $region11: #{tpu_custom_call.1} parent=5 // pred_region
        %s171 = ssub.s32 %s13, 1
        // Predicated region
        $region13: #{tpu_custom_call.1} parent=11 // pred_check
          %p172 = pneg %p51
        $region14: #{tpu_custom_call.1} parent=11 // pred_check_branch
          %174 = sbr.rel (%p172) target = $region16
        $region15: #{tpu_custom_call.1} parent=11 // pred_region
          %s176 = ssub.s32 64, 64
          %177 = vsyncadd [#allocation6], %s176
          %s178 = smul.addr %s22, 64
          %s179 = scalar_lea.hbm %s0, %s178
          %s181 = sshll.u32 [#allocation5], 4
          %s182 = int_to_ptr.vmem [resolvable:$true] %s181
          %184 = dma.hbm_to_vmem [thread:$0]  %s179, 64, %s182, [#allocation6]
        $region16: #{tpu_custom_call.1} parent=11 // pred_fallthru
          _
        // Predicated region
        $region17: #{tpu_custom_call.1} parent=11 // pred_check
          %p185 = pneg %p77
        $region18: #{tpu_custom_call.1} parent=11 // pred_check_branch
          %187 = sbr.rel (%p185) target = $region20
        $region19: #{tpu_custom_call.1} parent=11 // pred_region
          %s189 = ssub.s32 128, 128
          %190 = vsyncadd [#allocation9], %s189
          %s191 = smul.addr %s22, 128
          %s192 = scalar_lea.hbm %s1, %s191
          %s194 = sshll.u32 [#allocation8], 4
          %s195 = int_to_ptr.vmem [resolvable:$true] %s194
          %197 = dma.hbm_to_vmem [thread:$0]  %s192, 128, %s195, [#allocation9]
        $region20: #{tpu_custom_call.1} parent=11 // pred_fallthru
          _
      $region12: #{tpu_custom_call.1} parent=5 // pred_fallthru
        _
      %p198 = scmp.lt.s32.totalorder %s13, 4
      // Predicated region
      $region21: #{tpu_custom_call.1} parent=5 // pred_check
        %p199 = pneg %p198
      $region22: #{tpu_custom_call.1} parent=5 // pred_check_branch
        %201 = sbr.rel (%p199) target = $region24
      $region23: #{tpu_custom_call.1} parent=5 // pred_region
        // Predicated region
        $region25: #{tpu_custom_call.1} parent=23 // pred_check
          %p202 = pneg %p97
        $region26: #{tpu_custom_call.1} parent=23 // pred_check_branch
          %204 = sbr.rel (%p202) target = $region28
        $region27: #{tpu_custom_call.1} parent=23 // pred_region
          %s205 = sand.u32 %s13, 1
          %s206 = scalar_lea.sflag [#allocation6], %s205
          %s207 = sand.u32 %s87, 1
          %s208 = smul.addr %s207, 128
          %s209 = scalar_lea.vmem [#allocation10], %s208
          %s210 = smul.u32 32, %s21
          %s212 = ssub.s32 2048, 2048
          %213 = vsyncadd %s206, %s212
          %s214 = smul.addr %s210, 64
          %s215 = scalar_lea.hbm %s2, %s214
          %s216 = sshll.u32 %s209, 4
          %s217 = int_to_ptr.vmem [resolvable:$true] %s216
          %222 = dma.hbm_to_vmem [thread:$0]  %s215, 2048, %s217, %s206, 64, 64, 4
        $region28: #{tpu_custom_call.1} parent=23 // pred_fallthru
          _
        // Predicated region
        $region29: #{tpu_custom_call.1} parent=23 // pred_check
          %p223 = pneg %p125
        $region30: #{tpu_custom_call.1} parent=23 // pred_check_branch
          %225 = sbr.rel (%p223) target = $region32
        $region31: #{tpu_custom_call.1} parent=23 // pred_region
          %s226 = sand.u32 %s13, 1
          %s227 = scalar_lea.sflag [#allocation6], %s226
          %s228 = sand.u32 %s115, 1
          %s229 = smul.addr %s228, 4
          %s230 = scalar_lea.vmem [#allocation11], %s229
          %s231 = smul.u32 2, %s21
          %s233 = ssub.s32 64, 64
          %234 = vsyncadd %s227, %s233
          %s235 = smul.addr %s20, 8
          %s236 = sadd.s32 %s231, %s235
          %s237 = smul.addr %s236, 32
          %s238 = scalar_lea.hbm %s3, %s237
          %s240 = sshll.u32 %s230, 4
          %s241 = int_to_ptr.vmem [resolvable:$true] %s240
          %243 = dma.hbm_to_vmem [thread:$0]  %s238, 64, %s241, %s227
        $region32: #{tpu_custom_call.1} parent=23 // pred_fallthru
          _
      $region24: #{tpu_custom_call.1} parent=5 // pred_fallthru
        _
      %p244 = scmp.le.s32.totalorder 1, %s13
      %p245 = scmp.lt.s32.totalorder %s13, 5
      %p246 = pnand %p244, %p245
      %p247 = pneg %p246
      // Predicated region
      $region33: #{tpu_custom_call.1} parent=5 // pred_check
        _
      $region34: #{tpu_custom_call.1} parent=5 // pred_check_branch
        %249 = sbr.rel (%p246) target = $region36
      $region35: #{tpu_custom_call.1} parent=5 // pred_region
        %s250 = ssub.s32 %s13, 1
        // Predicated region
        $region37: #{tpu_custom_call.1} parent=35 // pred_check
          %p251 = pneg %p51
        $region38: #{tpu_custom_call.1} parent=35 // pred_check_branch
          %253 = sbr.rel (%p251) target = $region40
        $region39: #{tpu_custom_call.1} parent=35 // pred_region
          %254 = dma.done [#allocation6], 64
        $region40: #{tpu_custom_call.1} parent=35 // pred_fallthru
          _
        // Predicated region
        $region41: #{tpu_custom_call.1} parent=35 // pred_check
          %p255 = pneg %p77
        $region42: #{tpu_custom_call.1} parent=35 // pred_check_branch
          %257 = sbr.rel (%p255) target = $region44
        $region43: #{tpu_custom_call.1} parent=35 // pred_region
          %258 = dma.done [#allocation9], 128
        $region44: #{tpu_custom_call.1} parent=35 // pred_fallthru
          _
        %s259 = sand.u32 %s18, 1
        %s260 = scalar_lea.sflag [#allocation6], %s259
        %s261 = sand.u32 %s90, 1
        %s262 = smul.addr %s261, 128
        %s263 = scalar_lea.vmem [#allocation10], %s262
        // Predicated region
        $region45: #{tpu_custom_call.1} parent=35 // pred_check
          %p264 = pneg %p103
        $region46: #{tpu_custom_call.1} parent=35 // pred_check_branch
          %266 = sbr.rel (%p264) target = $region48
        $region47: #{tpu_custom_call.1} parent=35 // pred_region
          %267 = dma.done %s260, 2048
        $region48: #{tpu_custom_call.1} parent=35 // pred_fallthru
          _
        %s268 = sand.u32 %s18, 1
        %s269 = scalar_lea.sflag [#allocation6], %s268
        %s270 = sand.u32 %s118, 1
        %s271 = smul.addr %s270, 4
        %s272 = scalar_lea.vmem [#allocation11], %s271
        // Predicated region
        $region49: #{tpu_custom_call.1} parent=35 // pred_check
          %p273 = pneg %p131
        $region50: #{tpu_custom_call.1} parent=35 // pred_check_branch
          %275 = sbr.rel (%p273) target = $region52
        $region51: #{tpu_custom_call.1} parent=35 // pred_region
          %276 = dma.done %s269, 64
        $region52: #{tpu_custom_call.1} parent=35 // pred_fallthru
          _
        %p277 = pneg %p51
        %p278 = pneg %p48
        %p279 = pneg %p77
        %p280 = pneg %p74
        %s281 = sand.u32 %s18, 1
        %s282 = scalar_lea.sflag [#allocation6], %s281
        %s283 = sand.u32 %s90, 1
        %s284 = smul.addr %s283, 128
        %s285 = scalar_lea.vmem [#allocation10], %s284
        %p286 = pneg %p103
        %p287 = pneg %p100
        %s288 = sand.u32 %s18, 1
        %s289 = scalar_lea.sflag [#allocation6], %s288
        %s290 = sand.u32 %s118, 1
        %s291 = smul.addr %s290, 4
        %s292 = scalar_lea.vmem [#allocation11], %s291
        %p293 = pneg %p131
        %p294 = pneg %p128
        %p295 = pneg %p157
        %p296 = pneg %p154
        %s297 = smul.u32 32, %s23
        %s298 = smul.u32 2, %s23
        %p300 = scmp.eq.s32.totalorder %s23, 0
        // Predicated region
        $region53: #{tpu_custom_call.1} parent=35 // pred_check
          %p301 = pneg %p300
        $region54: #{tpu_custom_call.1} parent=35 // pred_check_branch
          %303 = sbr.rel (%p301) target = $region56
        $region55: #{tpu_custom_call.1} parent=35 // pred_region
          %vm304 = vcmask 7168
          %305 = vst.msk [vmem:[#allocation2] sm:$0xff] %vm304, -inf
          %306 = vst.msk [vmem:[#allocation3] sm:$0xff] %vm304, 0.0
          %307 = vst.msk [vmem:[#allocation4] sm:$0xff] %vm304, 0.0
        $region56: #{tpu_custom_call.1} parent=35 // pred_fallthru
          _
        %v308 = vld [vmem:[#allocation5] sm:$0xf]
        %v309 = vld [vmem:[%s263] sm:$0xf]
        %v310 = vld [vmem:[%s263 + $0x4] sm:$0xf]
        %v311 = vld [vmem:[%s263 + $0x8] sm:$0xf]
        %v312 = vld [vmem:[%s263 + $0xc] sm:$0xf]
        %v313 = vld [vmem:[%s263 + $0x10] sm:$0xf]
        %v314 = vld [vmem:[%s263 + $0x14] sm:$0xf]
        %v315 = vld [vmem:[%s263 + $0x18] sm:$0xf]
        %v316 = vld [vmem:[%s263 + $0x1c] sm:$0xf]
        %v317 = vld [vmem:[%s263 + $0x20] sm:$0xf]
        %v318 = vld [vmem:[%s263 + $0x24] sm:$0xf]
        %v319 = vld [vmem:[%s263 + $0x28] sm:$0xf]
        %v320 = vld [vmem:[%s263 + $0x2c] sm:$0xf]
        %v321 = vld [vmem:[%s263 + $0x30] sm:$0xf]
        %v322 = vld [vmem:[%s263 + $0x34] sm:$0xf]
        %v323 = vld [vmem:[%s263 + $0x38] sm:$0xf]
        %v324 = vld [vmem:[%s263 + $0x3c] sm:$0xf]
        %v325 = vld [vmem:[%s263 + $0x40] sm:$0xf]
        %v326 = vld [vmem:[%s263 + $0x44] sm:$0xf]
        %v327 = vld [vmem:[%s263 + $0x48] sm:$0xf]
        %v328 = vld [vmem:[%s263 + $0x4c] sm:$0xf]
        %v329 = vld [vmem:[%s263 + $0x50] sm:$0xf]
        %v330 = vld [vmem:[%s263 + $0x54] sm:$0xf]
        %v331 = vld [vmem:[%s263 + $0x58] sm:$0xf]
        %v332 = vld [vmem:[%s263 + $0x5c] sm:$0xf]
        %v333 = vld [vmem:[%s263 + $0x60] sm:$0xf]
        %v334 = vld [vmem:[%s263 + $0x64] sm:$0xf]
        %v335 = vld [vmem:[%s263 + $0x68] sm:$0xf]
        %v336 = vld [vmem:[%s263 + $0x6c] sm:$0xf]
        %v337 = vld [vmem:[%s263 + $0x70] sm:$0xf]
        %v338 = vld [vmem:[%s263 + $0x74] sm:$0xf]
        %v339 = vld [vmem:[%s263 + $0x78] sm:$0xf]
        %v340 = vld [vmem:[%s263 + $0x7c] sm:$0xf]
        %v373 = vunpack.c.l.b16 %v309
        %v374 = vunpack.c.l.b16 %v310
        %v375 = vunpack.c.l.b16 %v311
        %v376 = vunpack.c.l.b16 %v312
        %v377 = vunpack.c.l.b16 %v313
        %v378 = vunpack.c.l.b16 %v314
        %v379 = vunpack.c.l.b16 %v315
        %v380 = vunpack.c.l.b16 %v316
        %v381 = vunpack.c.l.b16 %v317
        %v382 = vunpack.c.l.b16 %v318
        %v383 = vunpack.c.l.b16 %v319
        %v384 = vunpack.c.l.b16 %v320
        %v385 = vunpack.c.l.b16 %v321
        %v386 = vunpack.c.l.b16 %v322
        %v387 = vunpack.c.l.b16 %v323
        %v388 = vunpack.c.l.b16 %v324
        %v389 = vunpack.c.l.b16 %v325
        %v390 = vunpack.c.l.b16 %v326
        %v391 = vunpack.c.l.b16 %v327
        %v392 = vunpack.c.l.b16 %v328
        %v393 = vunpack.c.l.b16 %v329
        %v394 = vunpack.c.l.b16 %v330
        %v395 = vunpack.c.l.b16 %v331
        %v396 = vunpack.c.l.b16 %v332
        %v397 = vunpack.c.l.b16 %v333
        %v398 = vunpack.c.l.b16 %v334
        %v399 = vunpack.c.l.b16 %v335
        %v400 = vunpack.c.l.b16 %v336
        %v401 = vunpack.c.l.b16 %v337
        %v402 = vunpack.c.l.b16 %v338
        %v403 = vunpack.c.l.b16 %v339
        %v404 = vunpack.c.l.b16 %v340
        %v405 = vpack.c.b16 %v374, %v373
        %v406 = vpack.c.b16 %v376, %v375
        %v407 = vpack.c.b16 %v378, %v377
        %v408 = vpack.c.b16 %v380, %v379
        %v409 = vpack.c.b16 %v382, %v381
        %v410 = vpack.c.b16 %v384, %v383
        %v411 = vpack.c.b16 %v386, %v385
        %v412 = vpack.c.b16 %v388, %v387
        %v413 = vpack.c.b16 %v390, %v389
        %v414 = vpack.c.b16 %v392, %v391
        %v415 = vpack.c.b16 %v394, %v393
        %v416 = vpack.c.b16 %v396, %v395
        %v417 = vpack.c.b16 %v398, %v397
        %v418 = vpack.c.b16 %v400, %v399
        %v419 = vpack.c.b16 %v402, %v401
        %v420 = vpack.c.b16 %v404, %v403
        %437 = vmatprep.subr.bf16.mxu0 0
        %438 = vmatpush1.bf16.xpose.msra.mxu0 %v405
        %439 = vmatprep.subr.bf16.mxu0 0
        %440 = vmatpush1.bf16.xpose.msra.mxu0 %v406
        %441 = vmatprep.subr.bf16.mxu0 0
        %442 = vmatpush1.bf16.xpose.msra.mxu0 %v407
        %443 = vmatprep.subr.bf16.mxu0 0
        %444 = vmatpush1.bf16.xpose.msra.mxu0 %v408
        %445 = vmatprep.subr.bf16.mxu0 0
        %446 = vmatpush1.bf16.xpose.msra.mxu0 %v409
        %447 = vmatprep.subr.bf16.mxu0 0
        %448 = vmatpush1.bf16.xpose.msra.mxu0 %v410
        %449 = vmatprep.subr.bf16.mxu0 0
        %450 = vmatpush1.bf16.xpose.msra.mxu0 %v411
        %451 = vmatprep.subr.bf16.mxu0 0
        %452 = vmatpush1.bf16.xpose.msra.mxu0 %v412
        %453 = vmatprep.subr.bf16.mxu0 0
        %454 = vmatpush1.bf16.xpose.msra.mxu0 %v413
        %455 = vmatprep.subr.bf16.mxu0 0
        %456 = vmatpush1.bf16.xpose.msra.mxu0 %v414
        %457 = vmatprep.subr.bf16.mxu0 0
        %458 = vmatpush1.bf16.xpose.msra.mxu0 %v415
        %459 = vmatprep.subr.bf16.mxu0 0
        %460 = vmatpush1.bf16.xpose.msra.mxu0 %v416
        %461 = vmatprep.subr.bf16.mxu0 0
        %462 = vmatpush1.bf16.xpose.msra.mxu0 %v417
        %463 = vmatprep.subr.bf16.mxu0 0
        %464 = vmatpush1.bf16.xpose.msra.mxu0 %v418
        %465 = vmatprep.subr.bf16.mxu0 0
        %466 = vmatpush1.bf16.xpose.msra.mxu0 %v419
        %467 = vmatprep.subr.bf16.mxu0 0
        %468 = vmatpush1.bf16.xpose.msra.mxu0 %v420
        %469 = vmatprep.mubr.bf16.mxu0 0
        %470 = vmatmul.mubr.bf16.gmra.mrb[0].mxu0 %v308
        %v471 = vpop.f32.mrb[0].mxu0
        %v472 = vadd.f32 0.0, %v471
        %v473 = vpop.f32.mrb[0].mxu0
        %v474 = vadd.f32 0.0, %v473
        %v475 = vpop.f32.mrb[0].mxu0
        %v476 = vpop.f32.mrb[0].mxu0
        %477 = vdwg.mxu0
        %v478 = vmul.f32 %v472, 14.285714
        %v479 = vmul.f32 %v474, 14.285714
        %v480 = vld [vmem:[%s272] sm:$0xf]
        %v481 = vunpack.c.0.s8 %v480
        %v482 = vunpack.c.1.s8 %v480
        %v483 = vcvt.s32.f32 %v481
        %v484 = vcvt.s32.f32 %v482
        %s485 = smul.u32 %s22, 8
        %s486 = smul.u32 %s23, 256
        %s487 = sadd.s32 %s485, 8
        %p488 = scmp.lt.s32.totalorder %s486, %s487
        %s489 = sadd.s32 %s486, 256
        %p490 = scmp.lt.s32.totalorder %s485, %s489
        %p491 = pnand %p488, %p490
        %p492 = pneg %p491
        %p493 = scmp.eq.s32.totalorder %s23, 3
        %p494 = por %p492, %p493
        // Predicated region
        $region57: #{tpu_custom_call.1} parent=35 // pred_check
          %p495 = pneg %p494
        $region58: #{tpu_custom_call.1} parent=35 // pred_check_branch
          %497 = sbr.rel (%p495) target = $region60
        $region59: #{tpu_custom_call.1} parent=35 // pred_region
          %v498 = vlaneseq
          %v499 = vshrl.u32 %v498, 7
          %v500 = vstv %s485
          %v501 = vadd.s32 %v500, %v499
          %v502 = vlaneseq
          %v503 = vand.u32 %v502, 127
          %v504 = vadd.s32 %v503, 128
          %v505 = vstv %s486
          %v506 = vadd.s32 %v505, %v503
          %v507 = vadd.s32 %v505, %v504
          %vm508 = vcmp.lt.s32.totalorder %v506, 1000
          %vm509 = vcmp.lt.s32.totalorder %v507, 1000
          %vm510 = vcmp.ne.s32.totalorder %v506, %v501
          %vm511 = vcmp.ne.s32.totalorder %v507, %v501
          %vm512 = vmand %vm508, %vm510
          %vm513 = vmand %vm509, %vm511
          %v514 = vsel %vm512, 1, 0
          %v515 = vsel %vm513, 1, 0
          %v516 = vcvt.s32.f32 %v514
          %v517 = vcvt.s32.f32 %v515
          %v518 = vmul.f32 %v483, %v516
          %v519 = vmul.f32 %v484, %v517
          %v520 = vld [vmem:[#allocation2] sm:$0xff]
          %v521 = vsel %vm508, %v478, -inf
          %v522 = vsel %vm509, %v479, -inf
          %v523 = vmax.f32 %v521, %v522
          %524 = vmax.xlane.f32.xlu0 %v523
          %v525 = vpop.xlane.xlu0 %524
          %v526 = vmax.f32 %v520, %v525
          %v527 = vsub.f32 %v520, %v526
          %v528 = vmul.f32 %v527, 1.442695
          %v529 = vpow.pop %v528
          %v530 = vld [vmem:[#allocation3] sm:$0xff]
          %v531 = vmul.f32 %v529, %v530
          %533 = vset.pattern.permute.xlu0 0
          %534 = vperm.xlu0 %533, %v526
          %v535 = vpop.permute.xlu0 %534
          %v537 = vsub.f32 %v478, %v535
          %v538 = vsub.f32 %v479, %v535
          %v539 = vmul.f32 %v537, 1.442695
          %v540 = vpow.pop %v539
          %v541 = vmul.f32 %v538, 1.442695
          %v542 = vpow.pop %v541
          %v543 = vmul.f32 %v540, %v516
          %v544 = vmul.f32 %v542, %v517
          %v545 = vadd.f32 %v543, %v544
          %546 = vadd.xlane.f32.xlu0 %v545
          %v547 = vpop.xlane.xlu0 %546
          %v548 = vadd.f32 %v531, %v547
          %vm549 = vcmask 7168
          %550 = vst.msk [vmem:[#allocation3] sm:$0xff] %vm549, %v548
          %v551 = vld [vmem:[#allocation4] sm:$0xff]
          %v552 = vmul.f32 %v518, %v478
          %v553 = vmul.f32 %v519, %v479
          %v554 = vadd.f32 %v552, %v553
          %555 = vadd.xlane.f32.xlu0 %v554
          %v556 = vpop.xlane.xlu0 %555
          %v557 = vadd.f32 %v551, %v556
          %558 = vst.msk [vmem:[#allocation4] sm:$0xff] %vm549, %v557
          %559 = vst.msk [vmem:[#allocation2] sm:$0xff] %vm549, %v526
        $region60: #{tpu_custom_call.1} parent=35 // pred_fallthru
          _
        %p560 = pneg %p494
        // Predicated region
        $region61: #{tpu_custom_call.1} parent=35 // pred_check
          _
        $region62: #{tpu_custom_call.1} parent=35 // pred_check_branch
          %562 = sbr.rel (%p494) target = $region64
        $region63: #{tpu_custom_call.1} parent=35 // pred_region
          %v563 = vld [vmem:[#allocation2] sm:$0xff]
          %v564 = vmax.f32 %v478, %v479
          %565 = vmax.xlane.f32.xlu0 %v564
          %v566 = vpop.xlane.xlu0 %565
          %v567 = vmax.f32 %v563, %v566
          %v568 = vsub.f32 %v563, %v567
          %v569 = vmul.f32 %v568, 1.442695
          %v570 = vpow.pop %v569
          %v571 = vld [vmem:[#allocation3] sm:$0xff]
          %v572 = vmul.f32 %v570, %v571
          %574 = vset.pattern.permute.xlu0 0
          %575 = vperm.xlu0 %574, %v567
          %v576 = vpop.permute.xlu0 %575
          %v578 = vsub.f32 %v478, %v576
          %v579 = vsub.f32 %v479, %v576
          %v580 = vmul.f32 %v578, 1.442695
          %v581 = vpow.pop %v580
          %v582 = vmul.f32 %v579, 1.442695
          %v583 = vpow.pop %v582
          %v584 = vadd.f32 %v581, %v583
          %585 = vadd.xlane.f32.xlu0 %v584
          %v586 = vpop.xlane.xlu0 %585
          %v587 = vadd.f32 %v572, %v586
          %vm588 = vcmask 7168
          %589 = vst.msk [vmem:[#allocation3] sm:$0xff] %vm588, %v587
          %v590 = vld [vmem:[#allocation4] sm:$0xff]
          %v591 = vmul.f32 %v483, %v478
          %v592 = vmul.f32 %v484, %v479
          %v593 = vadd.f32 %v591, %v592
          %594 = vadd.xlane.f32.xlu0 %v593
          %v595 = vpop.xlane.xlu0 %594
          %v596 = vadd.f32 %v590, %v595
          %597 = vst.msk [vmem:[#allocation4] sm:$0xff] %vm588, %v596
          %598 = vst.msk [vmem:[#allocation2] sm:$0xff] %vm588, %v567
        $region64: #{tpu_custom_call.1} parent=35 // pred_fallthru
          _
        // Predicated region
        $region65: #{tpu_custom_call.1} parent=35 // pred_check
          %p599 = pneg %p493
        $region66: #{tpu_custom_call.1} parent=35 // pred_check_branch
          %601 = sbr.rel (%p599) target = $region68
        $region67: #{tpu_custom_call.1} parent=35 // pred_region
          %v602 = vld [vmem:[#allocation2] sm:$0xff]
          %v603 = vld [vmem:[#allocation3] sm:$0xff]
          %v604 = vadd.f32 %v603, 1e-12
          %v605 = vlog2.pop %v604
          %v606 = vmul.f32 %v605, 0.6931472
          %v607 = vadd.f32 %v602, %v606
          %v608 = vld [vmem:[#allocation4] sm:$0xff]
          %v609 = vld [vmem:[#allocation8] sm:$0xff]
          %v610 = vmul.f32 %v609, %v607
          %v611 = vsub.f32 %v608, %v610
          %v612 = vrcp.pop %v609
          %v613 = vmul.f32 %v611, %v612
          %v614 = vmul.f32 %v613, -1.0
          %vm615 = vcmask 7168
          %616 = vst.msk [vmem:[#allocation12] sm:$0xff] %vm615, %v614
        $region68: #{tpu_custom_call.1} parent=35 // pred_fallthru
          _
        // Predicated region
        $region69: #{tpu_custom_call.1} parent=35 // pred_check
          %p617 = pneg %p154
        $region70: #{tpu_custom_call.1} parent=35 // pred_check_branch
          %619 = sbr.rel (%p617) target = $region72
        $region71: #{tpu_custom_call.1} parent=35 // pred_region
          %s621 = ssub.s32 128, 128
          %622 = vsyncadd [#allocation7], %s621
          %s623 = smul.addr %s22, 128
          %s624 = scalar_lea.hbm %s4, %s623
          %s626 = sshll.u32 [#allocation12], 4
          %s627 = int_to_ptr.vmem [resolvable:$true] %s626
          %629 = dma.vmem_to_hbm [thread:$0]  %s627, 128, %s624, [#allocation7]
        $region72: #{tpu_custom_call.1} parent=35 // pred_fallthru
          _
        // Predicated region
        $region73: #{tpu_custom_call.1} parent=35 // pred_check
          %p630 = pneg %p154
        $region74: #{tpu_custom_call.1} parent=35 // pred_check_branch
          %632 = sbr.rel (%p630) target = $region76
        $region75: #{tpu_custom_call.1} parent=35 // pred_region
          %633 = dma.done [#allocation7], 128
        $region76: #{tpu_custom_call.1} parent=35 // pred_fallthru
          _
      $region36: #{tpu_custom_call.1} parent=5 // pred_fallthru
        _
      %p634 = scmp.le.s32.totalorder 2, %s13
      // Predicated region
      $region77: #{tpu_custom_call.1} parent=5 // pred_check
        %p635 = pneg %p634
      $region78: #{tpu_custom_call.1} parent=5 // pred_check_branch
        %637 = sbr.rel (%p635) target = $region80
      $region79: #{tpu_custom_call.1} parent=5 // pred_region
        %s638 = ssub.s32 %s13, 2
      $region80: #{tpu_custom_call.1} parent=5 // pred_fallthru
        _
    $region6: #{tpu_custom_call.1} parent=1 // loop_footer
      %s17 = sadd.s32 1, %s13
    $region7: #{tpu_custom_call.1} parent=1 // loop_footer_branch
      %12 = sbr.rel target = $region3
    $region8: #{tpu_custom_call.1} parent=1 // loop_exit
      _
    %639 = vsyncpa [#allocation6], 1
    %s640 = scalar_lea.sflag [#allocation6], 1
    %641 = vsyncpa %s640, 1
    %642 = vsyncpa [#allocation9], 1
    %643 = vsyncpa [#allocation7], 1
    %s644 = scalar_lea.sflag [#allocation7], 1
    %645 = vsyncpa %s644, 1

</llo_original>
